<compile_context>
chip_gen: v5e
topology: v5e:2x2
jax: 0.10.0
libtpu: 0.0.40
codegen_flags: <defaults>
</compile_context>

<pallas_src>
import functools

import jax
import jax.numpy as jnp
import numpy as np
from jax.experimental import pallas as pl
from jax.experimental.pallas import tpu as pltpu

EPS = 1e-5
_VMEM_LIMIT = 48 * 1024 * 1024   # <= v7x's 64 MiB/TC; far above actual footprint


def _round_up(x, m):
    return (x + m - 1) // m * m


def _pick_images_per_tile(n_images, pixels_per_image, target_lanes):
    """Smallest divisor of N giving a 128-lane-aligned tile >= target_lanes."""
    best = None
    for d in range(1, n_images + 1):
        if n_images % d or (d * pixels_per_image) % 128:
            continue
        if best is None:
            best = d
        if d * pixels_per_image >= target_lanes:
            return d
    return best if best is not None else n_images


def _tiled_spec(rows, cols):
    """Activation stream: (rows, cols) block marching along the pixel axis."""
    return pl.BlockSpec((rows, cols), lambda i: (0, i))


def _resident_spec(shape):
    """Parameter / accumulator: constant index_map -> DMA'd once, stays in VMEM."""
    nd = len(shape)
    return pl.BlockSpec(shape, lambda i: (0,) * nd)


# --------------------------------------------------------------------------- #
# In-kernel helpers
# --------------------------------------------------------------------------- #
def _accumulate_bn(bnp_ref, a, gamma, beta, *, tile_cols, n_tiles):
    """Accumulate BN batch stats across M tiles into a resident (C, 2) block.

    Uses Chan's parallel (mean, M2) combine (numerically stable, unlike
    E[x^2]-E[x]^2).  On the last tile the block is overwritten with the
    per-channel affine (scale, shift) = (gamma*rsqrt(var+eps), beta-mean*scale)
    that the next pass applies.
    """
    i = pl.program_id(0)
    tmean = jnp.mean(a, axis=1, keepdims=True)                       # (C, 1)
    tm2 = jnp.sum(jnp.square(a - tmean), axis=1, keepdims=True)      # (C, 1)

    @pl.when(i == 0)
    def _():
        bnp_ref[:, 0:1] = tmean
        bnp_ref[:, 1:2] = tm2

    @pl.when(i > 0)
    def _():
        n_a = (i * tile_cols).astype(jnp.float32)
        n_b = jnp.float32(tile_cols)
        n_ab = n_a + n_b
        mean_a = bnp_ref[:, 0:1]
        m2_a = bnp_ref[:, 1:2]
        delta = tmean - mean_a
        bnp_ref[:, 0:1] = mean_a + delta * (n_b / n_ab)
        bnp_ref[:, 1:2] = m2_a + tm2 + jnp.square(delta) * (n_a * n_b / n_ab)

    @pl.when(i == n_tiles - 1)
    def _():
        mean = bnp_ref[:, 0:1]
        var = jnp.maximum(bnp_ref[:, 1:2] / jnp.float32(n_tiles * tile_cols), 0.0)
        scale = gamma * jax.lax.rsqrt(var + EPS)
        bnp_ref[:, 0:1] = scale
        bnp_ref[:, 1:2] = beta - mean * scale


# --------------------------------------------------------------------------- #
# Pass kernels
# --------------------------------------------------------------------------- #
def _conv1_stats_kernel(x_ref, w_ref, g_ref, b_ref, a1_ref, *rest,
                        c2p, tile_cols, n_tiles, downsampling):
    """conv1x1 (+ fused downsample conv via stacked weight) + BN-stats accum."""
    a = jnp.dot(w_ref[...], x_ref[...], preferred_element_type=jnp.float32)
    if downsampling:
        ad_ref, bnp_ref = rest
        a1_ref[...] = a[:c2p]          # bottleneck branch (pre-BN)
        ad_ref[...] = a[c2p:]          # residual/downsample branch (pre-BN)
    else:
        (bnp_ref,) = rest
        a1_ref[...] = a
    _accumulate_bn(bnp_ref, a, g_ref[...], b_ref[...],
                   tile_cols=tile_cols, n_tiles=n_tiles)


def _conv3x3_stats_kernel(a1_ref, bnp1_ref, w2_ref, g_ref, b_ref,
                          a2_ref, bnp2_ref, *, H, W, tile_cols, n_tiles):
    """BN1 + ReLU, then 3x3 conv (stride 1, pad 1) as 9 roll-taps, BN2 stats."""
    h = jnp.maximum(a1_ref[...] * bnp1_ref[:, 0:1] + bnp1_ref[:, 1:2], 0.0)

    # Hoisted border-validity masks (image borders inside the tile).  Tiles are
    # whole images, so any roll wrap lands exactly on a masked position.
    T = tile_cols
    col = jax.lax.broadcasted_iota(jnp.int32, (1, T), 1)
    pix = col % (H * W)
    hh = pix // W
    ww = pix % W
    h_ok = {-1: hh >= 1, 1: hh <= H - 2}
    w_ok = {-1: ww >= 1, 1: ww <= W - 2}

    # Center tap (no roll, no mask) seeds the accumulator.
    acc = jnp.dot(w2_ref[4], h.astype(jnp.bfloat16),
                  preferred_element_type=jnp.float32)
    t = 0
    for oh in (-1, 0, 1):
        for ow in (-1, 0, 1):
            if oh == 0 and ow == 0:
                t += 1
                continue
            s = oh * W + ow
            tap = pltpu.roll(h, shift=(-s) % T, axis=1)   # dest m <- h[:, m+s]
            if oh != 0 and ow != 0:
                mask = jnp.logical_and(h_ok[oh], w_ok[ow])
            elif oh != 0:
                mask = h_ok[oh]
            else:
                mask = w_ok[ow]
            tap = jnp.where(mask, tap, 0.0).astype(jnp.bfloat16)
            acc = acc + jnp.dot(w2_ref[t], tap,
                                preferred_element_type=jnp.float32)
            t += 1

    a2_ref[...] = acc
    _accumulate_bn(bnp2_ref, acc, g_ref[...], b_ref[...],
                   tile_cols=tile_cols, n_tiles=n_tiles)


def _conv3_stats_kernel(a2_ref, bnp2_ref, w3_ref, g_ref, b_ref,
                        a3_ref, bnp3_ref, *, tile_cols, n_tiles):
    """BN2 + ReLU, final 1x1 conv, BN3 stats."""
    h = jnp.maximum(a2_ref[...] * bnp2_ref[:, 0:1] + bnp2_ref[:, 1:2], 0.0)
    a = jnp.dot(w3_ref[...], h.astype(jnp.bfloat16),
                preferred_element_type=jnp.float32)
    a3_ref[...] = a
    _accumulate_bn(bnp3_ref, a, g_ref[...], b_ref[...],
                   tile_cols=tile_cols, n_tiles=n_tiles)


def _residual_relu_kernel(a3_ref, bnp3_ref, res_ref, *rest, downsampling):
    """BN3 (+ BN_d on the downsample branch), residual add, ReLU."""
    if downsampling:
        bnpd_ref, out_ref = rest
        res = res_ref[...] * bnpd_ref[:, 0:1] + bnpd_ref[:, 1:2]
    else:
        (out_ref,) = rest
        res = res_ref[...].astype(jnp.float32)
    y = a3_ref[...] * bnp3_ref[:, 0:1] + bnp3_ref[:, 1:2] + res
    out_ref[...] = jnp.maximum(y, 0.0)


# --------------------------------------------------------------------------- #
# Wrapper
# --------------------------------------------------------------------------- #
def bottleneck_forward(x_nchw, params, *, downsampling=False,
                       tile_target_lanes=512):
    """Bottleneck forward.  x_nchw: (N, Cin, H, W) float32 -> (N, C4, H, W)."""
    N, cin, H, W = x_nchw.shape
    HW = H * W
    M = N * HW
    places = params["w1"].shape[1]
    c4 = params["w3"].shape[1]
    c2p = _round_up(places, 8)           # pad bottleneck width to 8 sublanes
    if not downsampling:
        assert cin == c4, "identity residual requires in_places == places*expansion"

    imgs = _pick_images_per_tile(N, HW, tile_target_lanes)
    tile = imgs * HW                      # pixel columns per grid step
    n_tiles = M // tile

    f32, bf16 = jnp.float32, jnp.bfloat16

    def col(v, n=None, fill=0.0):
        v = jnp.asarray(v, f32).reshape(-1)
        if n is not None and v.shape[0] < n:
            v = jnp.concatenate([v, jnp.full((n - v.shape[0],), fill, f32)])
        return v.reshape(-1, 1)

    # ---- host-side parameter prep (padding / stacking / layout) ------------
    w1 = jnp.zeros((c2p, cin), f32).at[:places, :].set(jnp.asarray(params["w1"], f32).T)
    if downsampling:
        wcat = jnp.concatenate([w1, jnp.asarray(params["wd"], f32).T], axis=0).astype(bf16)
        gcat = jnp.concatenate([col(params["g1"], c2p, 1.0), col(params["gd"])], axis=0)
        bcat = jnp.concatenate([col(params["b1"], c2p), col(params["bd"])], axis=0)
    else:
        wcat = w1.astype(bf16)
        gcat = col(params["g1"], c2p, 1.0)
        bcat = col(params["b1"], c2p)
    ccat = wcat.shape[0]

    # (kh, kw, cin, cout) -> (9 taps, cout, cin), zero-padded to (9, c2p, c2p).
    w2 = jnp.transpose(jnp.asarray(params["w2"], f32), (0, 1, 3, 2)).reshape(9, places, places)
    w2p = jnp.zeros((9, c2p, c2p), f32).at[:, :places, :places].set(w2).astype(bf16)
    g2p, b2p = col(params["g2"], c2p, 1.0), col(params["b2"], c2p)

    w3p = jnp.zeros((c4, c2p), f32).at[:, :places].set(jnp.asarray(params["w3"], f32).T).astype(bf16)
    g3, b3 = col(params["g3"]), col(params["b3"])

    # Channel-major bf16 activation stream (largest HBM stream halved).
    x_cm = jnp.transpose(x_nchw, (1, 0, 2, 3)).reshape(cin, M).astype(bf16)

    arb = pltpu.CompilerParams(dimension_semantics=("arbitrary",),
                               vmem_limit_bytes=_VMEM_LIMIT)
    par = pltpu.CompilerParams(dimension_semantics=("parallel",),
                               vmem_limit_bytes=_VMEM_LIMIT)

    # ---- Pass 1: conv1x1 (+ downsample conv) + BN stats ---------------------
    p1_out_shapes = [jax.ShapeDtypeStruct((c2p, M), f32)]
    p1_out_specs = [_tiled_spec(c2p, tile)]
    if downsampling:
        p1_out_shapes.append(jax.ShapeDtypeStruct((c4, M), f32))
        p1_out_specs.append(_tiled_spec(c4, tile))
    p1_out_shapes.append(jax.ShapeDtypeStruct((ccat, 2), f32))
    p1_out_specs.append(_resident_spec((ccat, 2)))

    p1_outs = pl.pallas_call(
        functools.partial(_conv1_stats_kernel, c2p=c2p, tile_cols=tile,
                          n_tiles=n_tiles, downsampling=downsampling),
        grid=(n_tiles,),
        in_specs=[_tiled_spec(cin, tile), _resident_spec((ccat, cin)),
                  _resident_spec((ccat, 1)), _resident_spec((ccat, 1))],
        out_specs=tuple(p1_out_specs),
        out_shape=tuple(p1_out_shapes),
        compiler_params=arb,
    )(x_cm, wcat, gcat, bcat)
    if downsampling:
        a1, ad, bnp_cat = p1_outs
        bnp1, bnpd = bnp_cat[:c2p], bnp_cat[c2p:]
    else:
        a1, bnp1 = p1_outs
        ad, bnpd = None, None

    # ---- Pass 2: BN1+ReLU, conv3x3 (roll taps), BN2 stats --------------------
    a2, bnp2 = pl.pallas_call(
        functools.partial(_conv3x3_stats_kernel, H=H, W=W,
                          tile_cols=tile, n_tiles=n_tiles),
        grid=(n_tiles,),
        in_specs=[_tiled_spec(c2p, tile), _resident_spec((c2p, 2)),
                  _resident_spec((9, c2p, c2p)),
                  _resident_spec((c2p, 1)), _resident_spec((c2p, 1))],
        out_specs=(_tiled_spec(c2p, tile), _resident_spec((c2p, 2))),
        out_shape=(jax.ShapeDtypeStruct((c2p, M), f32),
                   jax.ShapeDtypeStruct((c2p, 2), f32)),
        compiler_params=arb,
    )(a1, bnp1, w2p, g2p, b2p)

    # ---- Pass 3: BN2+ReLU, conv1x1 (w3), BN3 stats ---------------------------
    a3, bnp3 = pl.pallas_call(
        functools.partial(_conv3_stats_kernel, tile_cols=tile, n_tiles=n_tiles),
        grid=(n_tiles,),
        in_specs=[_tiled_spec(c2p, tile), _resident_spec((c2p, 2)),
                  _resident_spec((c4, c2p)),
                  _resident_spec((c4, 1)), _resident_spec((c4, 1))],
        out_specs=(_tiled_spec(c4, tile), _resident_spec((c4, 2))),
        out_shape=(jax.ShapeDtypeStruct((c4, M), f32),
                   jax.ShapeDtypeStruct((c4, 2), f32)),
        compiler_params=arb,
    )(a2, bnp2, w3p, g3, b3)

    # ---- Pass 4: BN3 (+ BN_d), residual add, ReLU (fully parallel) -----------
    p4_in_specs = [_tiled_spec(c4, tile), _resident_spec((c4, 2)),
                   _tiled_spec(c4, tile)]
    p4_inputs = [a3, bnp3, ad if downsampling else x_cm]
    if downsampling:
        p4_in_specs.append(_resident_spec((c4, 2)))
        p4_inputs.append(bnpd)

    out_cm = pl.pallas_call(
        functools.partial(_residual_relu_kernel, downsampling=downsampling),
        grid=(n_tiles,),
        in_specs=p4_in_specs,
        out_specs=_tiled_spec(c4, tile),
        out_shape=jax.ShapeDtypeStruct((c4, M), f32),
        compiler_params=par,
    )(*p4_inputs)

    return jnp.transpose(out_cm.reshape(c4, N, H, W), (1, 0, 2, 3))


# --------------------------------------------------------------------------- #
# Synthetic params + pure-JAX reference (validation only)
# --------------------------------------------------------------------------- #
def init_params(key, in_places, places, expansion=4, downsampling=False):
    c4 = places * expansion
    ks = jax.random.split(key, 12)

    def nrm(k, shape, scale=0.2):
        return scale * jax.random.normal(k, shape, jnp.float32)

    p = {
        "w1": nrm(ks[0], (in_places, places)),              # 1x1 conv (Cin, C2)
        "g1": 1.0 + 0.1 * jax.random.normal(ks[1], (places,), jnp.float32),
        "b1": nrm(ks[2], (places,), 0.1),
        "w2": nrm(ks[3], (3, 3, places, places)),           # 3x3 conv, HWIO
        "g2": 1.0 + 0.1 * jax.random.normal(ks[4], (places,), jnp.float32),
        "b2": nrm(ks[5], (places,), 0.1),
        "w3": nrm(ks[6], (places, c4)),                     # 1x1 conv (C2, C4)
        "g3": 1.0 + 0.1 * jax.random.normal(ks[7], (c4,), jnp.float32),
        "b3": nrm(ks[8], (c4,), 0.1),
    }
    if downsampling:
        p["wd"] = nrm(ks[9], (in_places, c4))                # 1x1 downsample conv
        p["gd"] = 1.0 + 0.1 * jax.random.normal(ks[10], (c4,), jnp.float32)
        p["bd"] = nrm(ks[11], (c4,), 0.1)
    return p


def reference_forward(x_nchw, p, *, downsampling=False):
    x = jnp.transpose(x_nchw, (0, 2, 3, 1))

    def bn(a, g, b):
        m = jnp.mean(a, axis=(0, 1, 2), keepdims=True)
        v = jnp.mean((a - m) ** 2, axis=(0, 1, 2), keepdims=True)
        return ((a - m) * jax.lax.rsqrt(v + EPS) * g.reshape(1, 1, 1, -1)
                + b.reshape(1, 1, 1, -1))

    y = jnp.einsum("nhwc,cd->nhwd", x, p["w1"])
    y = jax.nn.relu(bn(y, p["g1"], p["b1"]))
    y = jax.lax.conv_general_dilated(
        y, p["w2"], (1, 1), "SAME",
        dimension_numbers=("NHWC", "HWIO", "NHWC"))
    y = jax.nn.relu(bn(y, p["g2"], p["b2"]))
    y = bn(jnp.einsum("nhwc,cd->nhwd", y, p["w3"]), p["g3"], p["b3"])
    if downsampling:
        r = bn(jnp.einsum("nhwc,cd->nhwd", x, p["wd"]), p["gd"], p["bd"])
    else:
        r = x
    return jnp.transpose(jax.nn.relu(y + r), (0, 3, 1, 2))


if __name__ == "__main__":
    key = jax.random.PRNGKey(0)
    kx1, kx2, kp1, kp2 = jax.random.split(key, 4)

    # Case 1: identity residual (in_places == places*expansion); 512-lane tiles,
    # grid of 2 steps -> exercises the cross-tile BN stats combine.
    x1 = jax.random.normal(kx1, (4, 16, 16, 16), jnp.float32)        # NCHW
    p1 = init_params(kp1, in_places=16, places=4, downsampling=False)
    out1 = jax.block_until_ready(bottleneck_forward(x1, p1, downsampling=False))
    ref1 = reference_forward(x1, p1, downsampling=False)
    np.testing.assert_allclose(np.asarray(out1), np.asarray(ref1),
                               atol=5e-2, rtol=5e-2)

    # Case 2: 1x1-conv downsample residual; 256-lane tiles, grid of 2 steps.
    x2 = jax.random.normal(kx2, (2, 8, 16, 16), jnp.float32)         # NCHW
    p2 = init_params(kp2, in_places=8, places=4, downsampling=True)
    out2 = jax.block_until_ready(
        bottleneck_forward(x2, p2, downsampling=True, tile_target_lanes=256))
    ref2 = reference_forward(x2, p2, downsampling=True)
    np.testing.assert_allclose(np.asarray(out2), np.asarray(ref2),
                               atol=5e-2, rtol=5e-2)

    assert out1.shape == (4, 16, 16, 16) and out2.shape == (2, 16, 16, 16)
    print("KERNEL_OK")
</pallas_src>

<mosaic_0001>
module attributes {stable_mosaic.version = 11 : i64} {
  func.func @_conv1_stats_kernel(%arg0: i32, %arg1: memref<16x512xbf16, #tpu.memory_space<vmem>>, %arg2: memref<8x16xbf16, #tpu.memory_space<vmem>>, %arg3: memref<8x1xf32, #tpu.memory_space<vmem>>, %arg4: memref<8x1xf32, #tpu.memory_space<vmem>>, %arg5: memref<8x512xf32, #tpu.memory_space<vmem>>, %arg6: memref<8x2xf32, #tpu.memory_space<vmem>>) attributes {dimension_semantics = [#tpu.dimension_semantics<arbitrary>], iteration_bounds = array<i64: 2>, scalar_prefetch = 0 : i64, scratch_operands = 0 : i64, tpu.core_type = #tpu.core_type<tc>, window_params = [{transform_indices = @transform_0, window_bounds = array<i64: 16, 512>}, {pipeline_mode = #tpu.pipeline_mode<synchronous>, transform_indices = @transform_1, window_bounds = array<i64: 8, 16>}, {pipeline_mode = #tpu.pipeline_mode<synchronous>, transform_indices = @transform_2, window_bounds = array<i64: 8, 1>}, {pipeline_mode = #tpu.pipeline_mode<synchronous>, transform_indices = @transform_3, window_bounds = array<i64: 8, 1>}, {transform_indices = @transform_4, window_bounds = array<i64: 8, 512>}, {pipeline_mode = #tpu.pipeline_mode<synchronous>, transform_indices = @transform_5, window_bounds = array<i64: 8, 2>}]} {
    %c0 = arith.constant 0 : index
    %c0_0 = arith.constant 0 : index
    %0 = vector.load %arg2[%c0, %c0_0] : memref<8x16xbf16, #tpu.memory_space<vmem>>, vector<8x16xbf16>
    %c0_1 = arith.constant 0 : index
    %c0_2 = arith.constant 0 : index
    %1 = vector.load %arg1[%c0_1, %c0_2] : memref<16x512xbf16, #tpu.memory_space<vmem>>, vector<16x512xbf16>
    %cst = arith.constant dense<0.000000e+00> : vector<8x512xf32>
    %2 = tpu.matmul %0, %1, %cst {dimension_numbers = #tpu.dot_dimension_numbers<[1], [0], [0], [1], [0, 0, 1, 1], [], []>} : vector<8x16xbf16>, vector<16x512xbf16>, vector<8x512xf32> -> vector<8x512xf32>
    %c0_3 = arith.constant 0 : index
    %c0_4 = arith.constant 0 : index
    %3 = vector.load %arg5[%c0_3, %c0_4] : memref<8x512xf32, #tpu.memory_space<vmem>>, vector<8x512xf32>
    tpu.vector_store %arg5[%c0_3, %c0_4], %2 {strides = array<i32>} : memref<8x512xf32, #tpu.memory_space<vmem>>, vector<8x512xf32>,
    %c0_5 = arith.constant 0 : index
    %c0_6 = arith.constant 0 : index
    %4 = vector.load %arg3[%c0_5, %c0_6] : memref<8x1xf32, #tpu.memory_space<vmem>>, vector<8x1xf32>
    %c0_7 = arith.constant 0 : index
    %c0_8 = arith.constant 0 : index
    %5 = vector.load %arg4[%c0_7, %c0_8] : memref<8x1xf32, #tpu.memory_space<vmem>>, vector<8x1xf32>
    %cst_9 = arith.constant dense<0.000000e+00> : vector<8xf32>
    %6 = vector.multi_reduction <add>, %2, %cst_9 [1] : vector<8x512xf32> to vector<8xf32>
    %7 = vector.shape_cast %6 : vector<8xf32> to vector<8x1xf32>
    %cst_10 = arith.constant 5.120000e+02 : f32
    %8 = vector.broadcast %cst_10 : f32 to vector<8x1xf32>
    %9 = arith.divf %7, %8 : vector<8x1xf32>
    %10 = vector.broadcast %9 : vector<8x1xf32> to vector<8x512xf32>
    %11 = arith.subf %2, %10 : vector<8x512xf32>
    %12 = arith.mulf %11, %11 : vector<8x512xf32>
    %cst_11 = arith.constant dense<0.000000e+00> : vector<8xf32>
    %13 = vector.multi_reduction <add>, %12, %cst_11 [1] : vector<8x512xf32> to vector<8xf32>
    %14 = vector.shape_cast %13 : vector<8xf32> to vector<8x1xf32>
    %c0_i32 = arith.constant 0 : i32
    %15 = arith.cmpi eq, %arg0, %c0_i32 : i32
    %16 = arith.extui %15 : i1 to i32
    %c0_i32_12 = arith.constant 0 : i32
    %17 = arith.cmpi ne, %16, %c0_i32_12 : i32
    scf.if %17 {
      %c0_16 = arith.constant 0 : index
      %c0_17 = arith.constant 0 : index
      %24 = vector.load %arg6[%c0_16, %c0_17] : memref<8x2xf32, #tpu.memory_space<vmem>>, vector<8x1xf32>
      tpu.vector_store %arg6[%c0_16, %c0_17], %9 {strides = array<i32>} : memref<8x2xf32, #tpu.memory_space<vmem>>, vector<8x1xf32>,
      %c0_18 = arith.constant 0 : index
      %c1 = arith.constant 1 : index
      %25 = vector.load %arg6[%c0_18, %c1] : memref<8x2xf32, #tpu.memory_space<vmem>>, vector<8x1xf32>
      tpu.vector_store %arg6[%c0_18, %c1], %14 {strides = array<i32>} : memref<8x2xf32, #tpu.memory_space<vmem>>, vector<8x1xf32>,
    } else {
    }
    %c0_i32_13 = arith.constant 0 : i32
    %18 = arith.cmpi sgt, %arg0, %c0_i32_13 : i32
    %19 = arith.extui %18 : i1 to i32
    %c0_i32_14 = arith.constant 0 : i32
    %20 = arith.cmpi ne, %19, %c0_i32_14 : i32
    scf.if %20 {
      %c512_i32 = arith.constant 512 : i32
      %24 = arith.muli %arg0, %c512_i32 : i32
      %25 = arith.sitofp %24 : i32 to f32
      %cst_16 = arith.constant 5.120000e+02 : f32
      %26 = arith.addf %25, %cst_16 : f32
      %c0_17 = arith.constant 0 : index
      %c0_18 = arith.constant 0 : index
      %27 = vector.load %arg6[%c0_17, %c0_18] : memref<8x2xf32, #tpu.memory_space<vmem>>, vector<8x1xf32>
      %c0_19 = arith.constant 0 : index
      %c1 = arith.constant 1 : index
      %28 = vector.load %arg6[%c0_19, %c1] : memref<8x2xf32, #tpu.memory_space<vmem>>, vector<8x1xf32>
      %29 = arith.subf %9, %27 : vector<8x1xf32>
      %cst_20 = arith.constant 5.120000e+02 : f32
      %30 = arith.divf %cst_20, %26 : f32
      %31 = vector.broadcast %30 : f32 to vector<8x1xf32>
      %32 = arith.mulf %29, %31 : vector<8x1xf32>
      %33 = arith.addf %27, %32 : vector<8x1xf32>
      %c0_21 = arith.constant 0 : index
      %c0_22 = arith.constant 0 : index
      %34 = vector.load %arg6[%c0_21, %c0_22] : memref<8x2xf32, #tpu.memory_space<vmem>>, vector<8x1xf32>
      tpu.vector_store %arg6[%c0_21, %c0_22], %33 {strides = array<i32>} : memref<8x2xf32, #tpu.memory_space<vmem>>, vector<8x1xf32>,
      %35 = arith.addf %28, %14 : vector<8x1xf32>
      %36 = arith.mulf %29, %29 : vector<8x1xf32>
      %cst_23 = arith.constant 5.120000e+02 : f32
      %37 = arith.mulf %25, %cst_23 : f32
      %38 = arith.divf %37, %26 : f32
      %39 = vector.broadcast %38 : f32 to vector<8x1xf32>
      %40 = arith.mulf %36, %39 : vector<8x1xf32>
      %41 = arith.addf %35, %40 : vector<8x1xf32>
      %c0_24 = arith.constant 0 : index
      %c1_25 = arith.constant 1 : index
      %42 = vector.load %arg6[%c0_24, %c1_25] : memref<8x2xf32, #tpu.memory_space<vmem>>, vector<8x1xf32>
      tpu.vector_store %arg6[%c0_24, %c1_25], %41 {strides = array<i32>} : memref<8x2xf32, #tpu.memory_space<vmem>>, vector<8x1xf32>,
    } else {
    }
    %c1_i32 = arith.constant 1 : i32
    %21 = arith.cmpi eq, %arg0, %c1_i32 : i32
    %22 = arith.extui %21 : i1 to i32
    %c0_i32_15 = arith.constant 0 : i32
    %23 = arith.cmpi ne, %22, %c0_i32_15 : i32
    scf.if %23 {
      %c0_16 = arith.constant 0 : index
      %c0_17 = arith.constant 0 : index
      %24 = vector.load %arg6[%c0_16, %c0_17] : memref<8x2xf32, #tpu.memory_space<vmem>>, vector<8x1xf32>
      %c0_18 = arith.constant 0 : index
      %c1 = arith.constant 1 : index
      %25 = vector.load %arg6[%c0_18, %c1] : memref<8x2xf32, #tpu.memory_space<vmem>>, vector<8x1xf32>
      %cst_19 = arith.constant 1.024000e+03 : f32
      %26 = vector.broadcast %cst_19 : f32 to vector<8x1xf32>
      %27 = arith.divf %25, %26 : vector<8x1xf32>
      %cst_20 = arith.constant 0.000000e+00 : f32
      %28 = vector.broadcast %cst_20 : f32 to vector<8x1xf32>
      %29 = arith.maximumf %27, %28 : vector<8x1xf32>
      %cst_21 = arith.constant 9.99999974E-6 : f32
      %30 = vector.broadcast %cst_21 : f32 to vector<8x1xf32>
      %31 = arith.addf %29, %30 : vector<8x1xf32>
      %32 = math.rsqrt %31 : vector<8x1xf32>
      %33 = arith.mulf %4, %32 : vector<8x1xf32>
      %c0_22 = arith.constant 0 : index
      %c0_23 = arith.constant 0 : index
      %34 = vector.load %arg6[%c0_22, %c0_23] : memref<8x2xf32, #tpu.memory_space<vmem>>, vector<8x1xf32>
      tpu.vector_store %arg6[%c0_22, %c0_23], %33 {strides = array<i32>} : memref<8x2xf32, #tpu.memory_space<vmem>>, vector<8x1xf32>,
      %35 = arith.mulf %24, %33 : vector<8x1xf32>
      %36 = arith.subf %5, %35 : vector<8x1xf32>
      %c0_24 = arith.constant 0 : index
      %c1_25 = arith.constant 1 : index
      %37 = vector.load %arg6[%c0_24, %c1_25] : memref<8x2xf32, #tpu.memory_space<vmem>>, vector<8x1xf32>
      tpu.vector_store %arg6[%c0_24, %c1_25], %36 {strides = array<i32>} : memref<8x2xf32, #tpu.memory_space<vmem>>, vector<8x1xf32>,
    } else {
    }
    return
  }
  func.func @transform_0(%arg0: i32) -> (i32, i32) {
    %c0_i32 = arith.constant 0 : i32
    %c0_i32_0 = arith.constant 0 : i32
    return %c0_i32, %arg0 : i32, i32
  }
  func.func @transform_1(%arg0: i32) -> (i32, i32) {
    %c0_i32 = arith.constant 0 : i32
    %c0_i32_0 = arith.constant 0 : i32
    %c0_i32_1 = arith.constant 0 : i32
    return %c0_i32, %c0_i32_0 : i32, i32
  }
  func.func @transform_2(%arg0: i32) -> (i32, i32) {
    %c0_i32 = arith.constant 0 : i32
    %c0_i32_0 = arith.constant 0 : i32
    %c0_i32_1 = arith.constant 0 : i32
    return %c0_i32, %c0_i32_0 : i32, i32
  }
  func.func @transform_3(%arg0: i32) -> (i32, i32) {
    %c0_i32 = arith.constant 0 : i32
    %c0_i32_0 = arith.constant 0 : i32
    %c0_i32_1 = arith.constant 0 : i32
    return %c0_i32, %c0_i32_0 : i32, i32
  }
  func.func @transform_4(%arg0: i32) -> (i32, i32) {
    %c0_i32 = arith.constant 0 : i32
    %c0_i32_0 = arith.constant 0 : i32
    return %c0_i32, %arg0 : i32, i32
  }
  func.func @transform_5(%arg0: i32) -> (i32, i32) {
    %c0_i32 = arith.constant 0 : i32
    %c0_i32_0 = arith.constant 0 : i32
    %c0_i32_1 = arith.constant 0 : i32
    return %c0_i32, %c0_i32_0 : i32, i32
  }
}

</mosaic_0001>

<llo_original>
// kernel: tpu_custom_call.1
$region0: #{tpu_custom_call.1}
  #allocation0 [shape = 'u32[]', space=smem, size = 0x4, offset = 0x4, fixed_abs, tag = 'smem constant byte address 0x4 - core index']
  #allocation1 [shape = 'u32[72,128]{1,0:T(1,128)}', space=vmem, size = 0x9000, scoped, tag = 'internal scratch']
  %s0 = inlined_call_operand.hbm [shape: bf16[16,1024], index: 0, kind: input, shape index: {}]
  %s1 = inlined_call_operand.vmem [shape: bf16[8,16], index: 1, kind: input, shape index: {}]
  %s2 = inlined_call_operand.vmem [shape: f32[8,1], index: 2, kind: input, shape index: {}]
  %s3 = inlined_call_operand.vmem [shape: f32[8,1], index: 3, kind: input, shape index: {}]
  %s4 = inlined_call_operand.hbm [shape: f32[8,1024], index: 4, kind: output, shape index: {0}]
  %s5 = inlined_call_operand.vmem [shape: f32[8,2], index: 5, kind: output, shape index: {1}]
  %6 = xla_tuple %s4, %s5
  %s7 = sld [smem:[#allocation0]]
  $region73: #{tpu_custom_call.1} parent=0
    _
  %s9 = ssub.s32 1, %s7
  %s10 = scalar_select 0, %s9, %s7
  $region1: #{tpu_custom_call.1} parent=0
    #allocation2 [shape = 'u8[32768]{0}', space=vmem, size = 0x8000, scoped, tag = 'input window, operand 0']
    #allocation3 [shape = 's32[2]{0}', space=sflag, size = 0x8, scoped, tag = 'scoped memory for tpu_custom_call.1']
    #allocation4 [shape = 's32[2]{0}', space=sflag, size = 0x8, scoped, tag = 'scoped memory for tpu_custom_call.1']
    #allocation5 [shape = 'u8[32768]{0}', space=vmem, size = 0x8000, scoped, tag = 'output window, operand 0']
    %11 = vsyncpa [#allocation3], 0
    %s12 = scalar_lea.sflag [#allocation3], 1
    %13 = vsyncpa %s12, 0
    %14 = vsyncpa [#allocation4], 0
    %s15 = scalar_lea.sflag [#allocation4], 1
    %16 = vsyncpa %s15, 0
    loop: start=0, step=1, limit=4
    $region2: #{tpu_custom_call.1} parent=1 // loop_pre_header
      _
    $region3: #{tpu_custom_call.1} parent=1 // loop_header
      %s18 = sphi 0, %s22
      %p19 = scmp.ge.s32.totalorder %s18, 4
      %s28 = sphi 0, %s30
      %s31 = sphi 0, %s28
      %s32 = sphi 0, %s31
      %s48 = sphi 0, %s32
      %s52 = sphi 0, %s52
      %s54 = sphi 0, %s52
      %s55 = sphi 0, %s54
      %s69 = sphi 0, %s55
      %s73 = sphi 0, %s73
      %s75 = sphi 0, %s73
      %s76 = sphi 0, %s75
      %s90 = sphi 0, %s76
      %s94 = sphi 0, %s94
      %s96 = sphi 0, %s94
      %s97 = sphi 0, %s96
      %s111 = sphi 0, %s97
      %s117 = sphi 0, %s119
      %s120 = sphi 0, %s117
      %s121 = sphi 0, %s120
      %s137 = sphi 0, %s121
      %s141 = sphi 0, %s141
      %s143 = sphi 0, %s141
      %s144 = sphi 0, %s143
      %s158 = sphi 0, %s144
    $region4: #{tpu_custom_call.1} parent=1 // loop_header_branch
      %21 = sbr.rel (%p19) target = $region8
    $region5: #{tpu_custom_call.1} parent=1 // loop_body
      %s23 = ssub.s32 %s18, 1
      %s24 = ssub.s32 %s18, 2
      %s25 = sadd.s32 %s18, 1
      %s26 = ssub.s32 %s18, %s25
      %p27 = scmp.eq.s32.totalorder %s26, 0
      %s29 = sadd.s32 %s28, 1
      %s30 = scalar_select %p27, %s28, %s29
      %p33 = pneg %p27
      %p34 = scmp.eq.s32.totalorder %s18, 1
      %p35 = por %p33, %p34
      %p36 = scmp.ne.s32.totalorder %s28, %s31
      %p37 = scmp.eq.s32.totalorder %s18, 0
      %p38 = por %p36, %p37
      %p39 = scmp.ne.s32.totalorder %s28, %s31
      %p40 = scmp.eq.s32.totalorder %s23, 1
      %p41 = por %p39, %p40
      %p42 = scmp.ne.s32.totalorder %s31, %s32
      %p43 = scmp.eq.s32.totalorder %s23, 0
      %p44 = por %p42, %p43
      %p45 = scmp.ne.s32.totalorder %s31, %s32
      %p46 = scmp.eq.s32.totalorder %s24, 1
      %p47 = por %p45, %p46
      %p49 = scmp.ne.s32.totalorder %s32, %s48
      %p50 = scmp.eq.s32.totalorder %s24, 0
      %p51 = por %p49, %p50
      %s53 = sadd.s32 %s52, 1
      %p56 = scmp.eq.s32.totalorder %s18, 1
      %p57 = scmp.ne.s32.totalorder %s52, %s54
      %p58 = scmp.eq.s32.totalorder %s18, 0
      %p59 = por %p57, %p58
      %p60 = scmp.ne.s32.totalorder %s52, %s54
      %p61 = scmp.eq.s32.totalorder %s23, 1
      %p62 = por %p60, %p61
      %p63 = scmp.ne.s32.totalorder %s54, %s55
      %p64 = scmp.eq.s32.totalorder %s23, 0
      %p65 = por %p63, %p64
      %p66 = scmp.ne.s32.totalorder %s54, %s55
      %p67 = scmp.eq.s32.totalorder %s24, 1
      %p68 = por %p66, %p67
      %p70 = scmp.ne.s32.totalorder %s55, %s69
      %p71 = scmp.eq.s32.totalorder %s24, 0
      %p72 = por %p70, %p71
      %s74 = sadd.s32 %s73, 1
      %p77 = scmp.eq.s32.totalorder %s18, 1
      %p78 = scmp.ne.s32.totalorder %s73, %s75
      %p79 = scmp.eq.s32.totalorder %s18, 0
      %p80 = por %p78, %p79
      %p81 = scmp.ne.s32.totalorder %s73, %s75
      %p82 = scmp.eq.s32.totalorder %s23, 1
      %p83 = por %p81, %p82
      %p84 = scmp.ne.s32.totalorder %s75, %s76
      %p85 = scmp.eq.s32.totalorder %s23, 0
      %p86 = por %p84, %p85
      %p87 = scmp.ne.s32.totalorder %s75, %s76
      %p88 = scmp.eq.s32.totalorder %s24, 1
      %p89 = por %p87, %p88
      %p91 = scmp.ne.s32.totalorder %s76, %s90
      %p92 = scmp.eq.s32.totalorder %s24, 0
      %p93 = por %p91, %p92
      %s95 = sadd.s32 %s94, 1
      %p98 = scmp.eq.s32.totalorder %s18, 1
      %p99 = scmp.ne.s32.totalorder %s94, %s96
      %p100 = scmp.eq.s32.totalorder %s18, 0
      %p101 = por %p99, %p100
      %p102 = scmp.ne.s32.totalorder %s94, %s96
      %p103 = scmp.eq.s32.totalorder %s23, 1
      %p104 = por %p102, %p103
      %p105 = scmp.ne.s32.totalorder %s96, %s97
      %p106 = scmp.eq.s32.totalorder %s23, 0
      %p107 = por %p105, %p106
      %p108 = scmp.ne.s32.totalorder %s96, %s97
      %p109 = scmp.eq.s32.totalorder %s24, 1
      %p110 = por %p108, %p109
      %p112 = scmp.ne.s32.totalorder %s97, %s111
      %p113 = scmp.eq.s32.totalorder %s24, 0
      %p114 = por %p112, %p113
      %s115 = ssub.s32 %s18, %s25
      %p116 = scmp.eq.s32.totalorder %s115, 0
      %s118 = sadd.s32 %s117, 1
      %s119 = scalar_select %p116, %s117, %s118
      %p122 = pneg %p116
      %p123 = scmp.eq.s32.totalorder %s18, 1
      %p124 = por %p122, %p123
      %p125 = scmp.ne.s32.totalorder %s117, %s120
      %p126 = scmp.eq.s32.totalorder %s18, 0
      %p127 = por %p125, %p126
      %p128 = scmp.ne.s32.totalorder %s117, %s120
      %p129 = scmp.eq.s32.totalorder %s23, 1
      %p130 = por %p128, %p129
      %p131 = scmp.ne.s32.totalorder %s120, %s121
      %p132 = scmp.eq.s32.totalorder %s23, 0
      %p133 = por %p131, %p132
      %p134 = scmp.ne.s32.totalorder %s120, %s121
      %p135 = scmp.eq.s32.totalorder %s24, 1
      %p136 = por %p134, %p135
      %p138 = scmp.ne.s32.totalorder %s121, %s137
      %p139 = scmp.eq.s32.totalorder %s24, 0
      %p140 = por %p138, %p139
      %s142 = sadd.s32 %s141, 1
      %p145 = scmp.eq.s32.totalorder %s18, 1
      %p146 = scmp.ne.s32.totalorder %s141, %s143
      %p147 = scmp.eq.s32.totalorder %s18, 0
      %p148 = por %p146, %p147
      %p149 = scmp.ne.s32.totalorder %s141, %s143
      %p150 = scmp.eq.s32.totalorder %s23, 1
      %p151 = por %p149, %p150
      %p152 = scmp.ne.s32.totalorder %s143, %s144
      %p153 = scmp.eq.s32.totalorder %s23, 0
      %p154 = por %p152, %p153
      %p155 = scmp.ne.s32.totalorder %s143, %s144
      %p156 = scmp.eq.s32.totalorder %s24, 1
      %p157 = por %p155, %p156
      %p159 = scmp.ne.s32.totalorder %s144, %s158
      %p160 = scmp.eq.s32.totalorder %s24, 0
      %p161 = por %p159, %p160
      %p162 = scmp.le.s32.totalorder 1, %s18
      %p163 = scmp.lt.s32.totalorder %s18, 3
      %p164 = pnand %p162, %p163
      %p165 = pneg %p164
      // Predicated region
      $region9: #{tpu_custom_call.1} parent=5 // pred_check
        _
      $region10: #{tpu_custom_call.1} parent=5 // pred_check_branch
        %167 = sbr.rel (%p164) target = $region12
      $region11: #{tpu_custom_call.1} parent=5 // pred_region
        %s168 = ssub.s32 %s18, 1
        // Predicated region
        $region13: #{tpu_custom_call.1} parent=11 // pred_check
          %p169 = pneg %p65
        $region14: #{tpu_custom_call.1} parent=11 // pred_check_branch
          %171 = sbr.rel (%p169) target = $region16
        $region15: #{tpu_custom_call.1} parent=11 // pred_region
          _
        $region16: #{tpu_custom_call.1} parent=11 // pred_fallthru
          _
        // Predicated region
        $region17: #{tpu_custom_call.1} parent=11 // pred_check
          %p172 = pneg %p86
        $region18: #{tpu_custom_call.1} parent=11 // pred_check_branch
          %174 = sbr.rel (%p172) target = $region20
        $region19: #{tpu_custom_call.1} parent=11 // pred_region
          _
        $region20: #{tpu_custom_call.1} parent=11 // pred_fallthru
          _
        // Predicated region
        $region21: #{tpu_custom_call.1} parent=11 // pred_check
          %p175 = pneg %p107
        $region22: #{tpu_custom_call.1} parent=11 // pred_check_branch
          %177 = sbr.rel (%p175) target = $region24
        $region23: #{tpu_custom_call.1} parent=11 // pred_region
          _
        $region24: #{tpu_custom_call.1} parent=11 // pred_fallthru
          _
      $region12: #{tpu_custom_call.1} parent=5 // pred_fallthru
        _
      %p178 = scmp.lt.s32.totalorder %s18, 2
      // Predicated region
      $region25: #{tpu_custom_call.1} parent=5 // pred_check
        %p179 = pneg %p178
      $region26: #{tpu_custom_call.1} parent=5 // pred_check_branch
        %181 = sbr.rel (%p179) target = $region28
      $region27: #{tpu_custom_call.1} parent=5 // pred_region
        // Predicated region
        $region29: #{tpu_custom_call.1} parent=27 // pred_check
          %p182 = pneg %p38
        $region30: #{tpu_custom_call.1} parent=27 // pred_check_branch
          %184 = sbr.rel (%p182) target = $region32
        $region31: #{tpu_custom_call.1} parent=27 // pred_region
          %s185 = sand.u32 %s28, 1
          %s186 = scalar_lea.sflag [#allocation3], %s185
          %s187 = sand.u32 %s28, 1
          %s188 = smul.addr %s187, 32
          %s189 = scalar_lea.vmem [#allocation2], %s188
          %s190 = smul.u32 4, %s18
          %192 = vsyncadd %s186, 0
          %s193 = smul.addr %s190, 4
          %s194 = scalar_lea.hbm %s0, %s193
          %s195 = sshll.u32 %s194, 4
          %s196 = int_to_ptr.hbm [resolvable:$true] %s195
          %s197 = sshll.u32 %s189, 4
          %s198 = int_to_ptr.vmem [resolvable:$true] %s197
          %203 = dma.hbm_to_vmem [thread:$0]  %s196, 512, %s198, %s186, 512, 256, 16
        $region32: #{tpu_custom_call.1} parent=27 // pred_fallthru
          _
      $region28: #{tpu_custom_call.1} parent=5 // pred_fallthru
        _
      %p204 = scmp.le.s32.totalorder 1, %s18
      %p205 = scmp.lt.s32.totalorder %s18, 3
      %p206 = pnand %p204, %p205
      %p207 = pneg %p206
      // Predicated region
      $region33: #{tpu_custom_call.1} parent=5 // pred_check
        _
      $region34: #{tpu_custom_call.1} parent=5 // pred_check_branch
        %209 = sbr.rel (%p206) target = $region36
      $region35: #{tpu_custom_call.1} parent=5 // pred_region
        %s210 = ssub.s32 %s18, 1
        %s211 = sand.u32 %s31, 1
        %s212 = scalar_lea.sflag [#allocation3], %s211
        %s213 = sand.u32 %s31, 1
        %s214 = smul.addr %s213, 32
        %s215 = scalar_lea.vmem [#allocation2], %s214
        // Predicated region
        $region37: #{tpu_custom_call.1} parent=35 // pred_check
          %p216 = pneg %p44
        $region38: #{tpu_custom_call.1} parent=35 // pred_check_branch
          %218 = sbr.rel (%p216) target = $region40
        $region39: #{tpu_custom_call.1} parent=35 // pred_region
          %220 = dma.done %s212, 512
        $region40: #{tpu_custom_call.1} parent=35 // pred_fallthru
          _
        %s221 = sand.u32 %s31, 1
        %s222 = scalar_lea.sflag [#allocation3], %s221
        %s223 = sand.u32 %s31, 1
        %s224 = smul.addr %s223, 32
        %s225 = scalar_lea.vmem [#allocation2], %s224
        %p226 = pneg %p44
        %p227 = pneg %p41
        %p228 = pneg %p65
        %p229 = pneg %p62
        %p230 = pneg %p86
        %p231 = pneg %p83
        %p232 = pneg %p107
        %p233 = pneg %p104
        %p234 = pneg %p133
        %p235 = pneg %p130
        %s236 = sand.u32 %s120, 1
        %s237 = scalar_lea.sflag [#allocation4], %s236
        %s238 = sand.u32 %s120, 1
        %s239 = smul.addr %s238, 32
        %s240 = scalar_lea.vmem [#allocation5], %s239
        %p241 = pneg %p154
        %p242 = pneg %p151
        %s243 = smul.u32 4, %s23
        %s244 = smul.u32 4, %s23
        %v246 = vld [vmem:[%s1] sm:$0xf]
        %v247 = vld [vmem:[%s215] sm:$0xff]
        %v248 = vld [vmem:[%s215 + $0x8] sm:$0xff]
        %v249 = vld [vmem:[%s215 + $0x10] sm:$0xff]
        %v250 = vld [vmem:[%s215 + $0x18] sm:$0xff]
        %v255 = vunpack.c.l.b16 %v247
        %v256 = vunpack.c.h.b16 %v247
        %v257 = vunpack.c.l.b16 %v248
        %v258 = vunpack.c.h.b16 %v248
        %v259 = vunpack.c.l.b16 %v249
        %v260 = vunpack.c.h.b16 %v249
        %v261 = vunpack.c.l.b16 %v250
        %v262 = vunpack.c.h.b16 %v250
        %v263 = vpack.c.b16 %v259, %v255
        %v264 = vpack.c.b16 %v260, %v256
        %v265 = vpack.c.b16 %v261, %v257
        %v266 = vpack.c.b16 %v262, %v258
        %vm271 = vcmask 130048
        %v273 = vsel %vm271, %v246, 0
        %275 = vmatpush.bf16.msra.mxu0 0
        %276 = vmatpush.bf16.msra.mxu0 0
        %277 = vmatpush.bf16.msra.mxu0 0
        %278 = vmatpush.bf16.msra.mxu0 0
        %279 = vmatpush.bf16.msra.mxu0 0
        %280 = vmatpush.bf16.msra.mxu0 0
        %281 = vmatpush.bf16.msra.mxu0 0
        %282 = vmatpush.bf16.msra.mxu0 %v263
        %283 = vmatmul.bf16.gmra.mxu0 %v273
        %v284 = vpop.f32.mrf.mxu0
        %v285 = vadd.f32 0.0, %v284
        %v286 = vpop.f32.mrf.mxu0
        %287 = vdwg.mxu0
        %288 = vmatpush.bf16.msra.mxu0 0
        %289 = vmatpush.bf16.msra.mxu0 0
        %290 = vmatpush.bf16.msra.mxu0 0
        %291 = vmatpush.bf16.msra.mxu0 0
        %292 = vmatpush.bf16.msra.mxu0 0
        %293 = vmatpush.bf16.msra.mxu0 0
        %294 = vmatpush.bf16.msra.mxu0 0
        %295 = vmatpush.bf16.msra.mxu0 %v264
        %296 = vmatmul.bf16.gmra.mxu0 %v273
        %v297 = vpop.f32.mrf.mxu0
        %v298 = vadd.f32 0.0, %v297
        %v299 = vpop.f32.mrf.mxu0
        %300 = vdwg.mxu0
        %301 = vmatpush.bf16.msra.mxu0 0
        %302 = vmatpush.bf16.msra.mxu0 0
        %303 = vmatpush.bf16.msra.mxu0 0
        %304 = vmatpush.bf16.msra.mxu0 0
        %305 = vmatpush.bf16.msra.mxu0 0
        %306 = vmatpush.bf16.msra.mxu0 0
        %307 = vmatpush.bf16.msra.mxu0 0
        %308 = vmatpush.bf16.msra.mxu0 %v265
        %309 = vmatmul.bf16.gmra.mxu0 %v273
        %v310 = vpop.f32.mrf.mxu0
        %v311 = vadd.f32 0.0, %v310
        %v312 = vpop.f32.mrf.mxu0
        %313 = vdwg.mxu0
        %314 = vmatpush.bf16.msra.mxu0 0
        %315 = vmatpush.bf16.msra.mxu0 0
        %316 = vmatpush.bf16.msra.mxu0 0
        %317 = vmatpush.bf16.msra.mxu0 0
        %318 = vmatpush.bf16.msra.mxu0 0
        %319 = vmatpush.bf16.msra.mxu0 0
        %320 = vmatpush.bf16.msra.mxu0 0
        %321 = vmatpush.bf16.msra.mxu0 %v266
        %322 = vmatmul.bf16.gmra.mxu0 %v273
        %v323 = vpop.f32.mrf.mxu0
        %v324 = vadd.f32 0.0, %v323
        %v325 = vpop.f32.mrf.mxu0
        %326 = vdwg.mxu0
        %327 = vst [vmem:[%s240] sm:$0xff] %v285
        %328 = vst [vmem:[%s240 + $0x8] sm:$0xff] %v298
        %329 = vst [vmem:[%s240 + $0x10] sm:$0xff] %v311
        %330 = vst [vmem:[%s240 + $0x18] sm:$0xff] %v324
        %v331 = vld [vmem:[%s2] sm:$0xff]
        %v332 = vld [vmem:[%s3] sm:$0xff]
        %v333 = vadd.f32 %v285, %v298
        %v334 = vadd.f32 %v333, %v311
        %v335 = vadd.f32 %v334, %v324
        %336 = vadd.xlane.f32.xlu0 %v335
        %v337 = vpop.xlane.xlu0 %336
        %v338 = vrcp.pop 512.0
        %v339 = vmul.f32 512.0, %v338
        %v340 = vsub.f32 1.0, %v339
        %v341 = vmul.f32 %v338, %v340
        %v342 = vadd.f32 %v338, %v341
        %vm343 = vweird.f32 %v338
        %v344 = vsel %vm343, %v338, %v342
        %v345 = vmul.f32 %v337, %v344
        %v346 = vsub.f32 %v285, %v345
        %v347 = vsub.f32 %v298, %v345
        %v348 = vsub.f32 %v311, %v345
        %v349 = vsub.f32 %v324, %v345
        %v350 = vmul.f32 %v346, %v346
        %v351 = vmul.f32 %v347, %v347
        %v352 = vmul.f32 %v348, %v348
        %v353 = vmul.f32 %v349, %v349
        %v354 = vadd.f32 %v350, %v351
        %v355 = vadd.f32 %v354, %v352
        %v356 = vadd.f32 %v355, %v353
        %357 = vadd.xlane.f32.xlu0 %v356
        %v358 = vpop.xlane.xlu0 %357
        %p359 = scmp.eq.s32.totalorder %s23, 0
        // Predicated region
        $region41: #{tpu_custom_call.1} parent=35 // pred_check
          %p360 = pneg %p359
        $region42: #{tpu_custom_call.1} parent=35 // pred_check_branch
          %362 = sbr.rel (%p360) target = $region44
        $region43: #{tpu_custom_call.1} parent=35 // pred_region
          %vm363 = vcmask 7168
          %364 = vst.msk [vmem:[%s5] sm:$0xff] %vm363, %v345
          %vm365 = vcmask 15368
          %366 = vst.msk [vmem:[%s5] sm:$0xff] %vm365, %v358
        $region44: #{tpu_custom_call.1} parent=35 // pred_fallthru
          _
        %p367 = scmp.gt.s32.totalorder %s23, 0
        // Predicated region
        $region45: #{tpu_custom_call.1} parent=35 // pred_check
          %p368 = pneg %p367
        $region46: #{tpu_custom_call.1} parent=35 // pred_check_branch
          %370 = sbr.rel (%p368) target = $region48
        $region47: #{tpu_custom_call.1} parent=35 // pred_region
          %s371 = smul.u32 %s23, 512
          %s372 = scvt.s32.f32 %s371
          %s373 = sadd.f32 %s372, 512.0
          %v374 = vld [vmem:[%s5] sm:$0xff]
          %v375 = vsub.f32 %v345, %v374
          %v376 = vstv %s373
          %v377 = vrcp.pop %v376
          %v378 = vmul.f32 %v376, %v377
          %v379 = vsub.f32 1.0, %v378
          %v380 = vmul.f32 %v377, %v379
          %v381 = vadd.f32 %v377, %v380
          %vm382 = vweird.f32 %v376
          %vm383 = vweird.f32 %v377
          %vm384 = vmor %vm382, %vm383
          %v385 = vsel %vm384, %v377, %v381
          %v386 = vand.u32 2147483647, %v376
          %vm387 = vcmp.eq.f32.partialorder %v386, 8.507059e+37
          %v388 = vand.u32 %v376, 2147483648
          %v389 = vor.u32 1.1754944e-38, %v388
          %v390 = vsel %vm387, %v389, %v385
          %s391 = vtos %v390
          %s392 = smul.f32 512.0, %s391
          %v393 = vstv %s392
          %v394 = vmul.f32 %v375, %v393
          %v395 = vadd.f32 %v374, %v394
          %vm396 = vcmask 7168
          %397 = vst.msk [vmem:[%s5] sm:$0xff] %vm396, %v395
          %v398 = vadd.f32 %v374, %v358
          %v399 = vmul.f32 %v375, %v375
          %s400 = smul.f32 %s372, 512.0
          %v401 = vstv %s373
          %v402 = vrcp.pop %v401
          %v403 = vmul.f32 %v401, %v402
          %v404 = vsub.f32 1.0, %v403
          %v405 = vmul.f32 %v402, %v404
          %v406 = vadd.f32 %v402, %v405
          %vm407 = vweird.f32 %v401
          %vm408 = vweird.f32 %v402
          %vm409 = vmor %vm407, %vm408
          %v410 = vsel %vm409, %v402, %v406
          %v411 = vand.u32 2147483647, %v401
          %vm412 = vcmp.eq.f32.partialorder %v411, 8.507059e+37
          %v413 = vand.u32 %v401, 2147483648
          %v414 = vor.u32 1.1754944e-38, %v413
          %v415 = vsel %vm412, %v414, %v410
          %s416 = vtos %v415
          %s417 = smul.f32 %s400, %s416
          %v418 = vstv %s417
          %v419 = vmul.f32 %v399, %v418
          %421 = vrot.lane.b32.xlu0 %v419, 1
          %v422 = vpop.permute.xlu0 %421
          %v424 = vadd.f32 %v398, %v422
          %vm425 = vcmask 15368
          %426 = vst.msk [vmem:[%s5] sm:$0xff] %vm425, %v424
        $region48: #{tpu_custom_call.1} parent=35 // pred_fallthru
          _
        %p427 = scmp.eq.s32.totalorder %s23, 1
        // Predicated region
        $region49: #{tpu_custom_call.1} parent=35 // pred_check
          %p428 = pneg %p427
        $region50: #{tpu_custom_call.1} parent=35 // pred_check_branch
          %430 = sbr.rel (%p428) target = $region52
        $region51: #{tpu_custom_call.1} parent=35 // pred_region
          %v431 = vld [vmem:[%s5] sm:$0xff]
          %v432 = vrcp.pop 1024.0
          %v433 = vmul.f32 1024.0, %v432
          %v434 = vsub.f32 1.0, %v433
          %v435 = vmul.f32 %v432, %v434
          %v436 = vadd.f32 %v432, %v435
          %vm437 = vweird.f32 %v432
          %v438 = vsel %vm437, %v432, %v436
          %v439 = vmul.f32 %v431, %v438
          %v440 = vmax.f32 %v439, 0.0
          %v441 = vadd.f32 %v440, 1e-05
          %v442 = vrsqrt.pop %v441
          %v443 = vmul.f32 %v442, %v441
          %v444 = vmul.f32 %v443, %v442
          %v445 = vmul.f32 0.5, %v444
          %v446 = vsub.f32 1.5, %v445
          %v447 = vmul.f32 %v442, %v446
          %vm448 = vweird.f32 %v441
          %vm449 = vweird.f32 %v442
          %vm450 = vmor %vm448, %vm449
          %v451 = vsel %vm450, %v442, %v447
          %453 = vrot.lane.b32.xlu0 %v451, 127
          %v454 = vpop.permute.xlu0 %453
          %v456 = vmul.f32 %v331, %v454
          %vm457 = vcmask 7168
          %458 = vst.msk [vmem:[%s5] sm:$0xff] %vm457, %v456
          %v459 = vmul.f32 %v431, %v456
          %v460 = vsub.f32 %v332, %v459
          %462 = vrot.lane.b32.xlu0 %v460, 1
          %v463 = vpop.permute.xlu0 %462
          %vm465 = vcmask 15368
          %466 = vst.msk [vmem:[%s5] sm:$0xff] %vm465, %v463
        $region52: #{tpu_custom_call.1} parent=35 // pred_fallthru
          _
        %s467 = sand.u32 %s120, 1
        %s468 = scalar_lea.sflag [#allocation4], %s467
        %s469 = sand.u32 %s120, 1
        %s470 = smul.addr %s469, 32
        %s471 = scalar_lea.vmem [#allocation5], %s470
        // Predicated region
        $region53: #{tpu_custom_call.1} parent=35 // pred_check
          %p472 = pneg %p130
        $region54: #{tpu_custom_call.1} parent=35 // pred_check_branch
          %474 = sbr.rel (%p472) target = $region56
        $region55: #{tpu_custom_call.1} parent=35 // pred_region
          %s475 = smul.u32 4, %s23
          %477 = vsyncadd %s468, 0
          %s478 = smul.addr %s475, 8
          %s479 = scalar_lea.hbm %s4, %s478
          %s481 = sshll.u32 %s471, 4
          %s482 = int_to_ptr.vmem [resolvable:$true] %s481
          %s483 = sshll.u32 %s479, 4
          %s484 = int_to_ptr.hbm [resolvable:$true] %s483
          %486 = dma.vmem_to_hbm [thread:$0]  %s482, 512, %s484, %s468
        $region56: #{tpu_custom_call.1} parent=35 // pred_fallthru
          _
        // Predicated region
        $region57: #{tpu_custom_call.1} parent=35 // pred_check
          %p487 = pneg %p151
        $region58: #{tpu_custom_call.1} parent=35 // pred_check_branch
          %489 = sbr.rel (%p487) target = $region60
        $region59: #{tpu_custom_call.1} parent=35 // pred_region
          _
        $region60: #{tpu_custom_call.1} parent=35 // pred_fallthru
          _
        // Predicated region
        $region61: #{tpu_custom_call.1} parent=35 // pred_check
          %p490 = pneg %p151
        $region62: #{tpu_custom_call.1} parent=35 // pred_check_branch
          %492 = sbr.rel (%p490) target = $region64
        $region63: #{tpu_custom_call.1} parent=35 // pred_region
          _
        $region64: #{tpu_custom_call.1} parent=35 // pred_fallthru
          _
      $region36: #{tpu_custom_call.1} parent=5 // pred_fallthru
        _
      %p493 = scmp.le.s32.totalorder 2, %s18
      // Predicated region
      $region65: #{tpu_custom_call.1} parent=5 // pred_check
        %p494 = pneg %p493
      $region66: #{tpu_custom_call.1} parent=5 // pred_check_branch
        %496 = sbr.rel (%p494) target = $region68
      $region67: #{tpu_custom_call.1} parent=5 // pred_region
        %s497 = ssub.s32 %s18, 2
        // Predicated region
        $region69: #{tpu_custom_call.1} parent=67 // pred_check
          %p498 = pneg %p136
        $region70: #{tpu_custom_call.1} parent=67 // pred_check_branch
          %500 = sbr.rel (%p498) target = $region72
        $region71: #{tpu_custom_call.1} parent=67 // pred_region
          %s501 = sand.u32 %s121, 1
          %s502 = scalar_lea.sflag [#allocation4], %s501
          %s503 = sand.u32 %s121, 1
          %s504 = smul.addr %s503, 32
          %s505 = scalar_lea.vmem [#allocation5], %s504
          %507 = dma.done %s502, 512
        $region72: #{tpu_custom_call.1} parent=67 // pred_fallthru
          _
      $region68: #{tpu_custom_call.1} parent=5 // pred_fallthru
        _
    $region6: #{tpu_custom_call.1} parent=1 // loop_footer
      %s22 = sadd.s32 1, %s18
    $region7: #{tpu_custom_call.1} parent=1 // loop_footer_branch
      %17 = sbr.rel target = $region3
    $region8: #{tpu_custom_call.1} parent=1 // loop_exit
      _
    %508 = vsyncpa [#allocation3], 1
    %s509 = scalar_lea.sflag [#allocation3], 1
    %510 = vsyncpa %s509, 1
    %511 = vsyncpa [#allocation4], 1
    %s512 = scalar_lea.sflag [#allocation4], 1
    %513 = vsyncpa %s512, 1

</llo_original>
